<compile_context>
chip_gen: v7x
topology: tpu7x:2x2x1
jax: 0.10.0
libtpu: 0.0.40
codegen_flags: <defaults>
</compile_context>

<pallas_src>
import functools

import jax
import jax.numpy as jnp
from jax.experimental import pallas as pl
from jax.experimental.pallas import tpu as pltpu


# ---------------------------------------------------------------------------
# Kernels
# ---------------------------------------------------------------------------

def _row_mask(shape_2d, row0, n_total):
    row_ids = jax.lax.broadcasted_iota(jnp.int32, shape_2d, 0) + row0
    return row_ids < n_total


def _poly_ce_dense_kernel(logits_ref, labels_ref, out_ref, *, epsilon, n_total, tile_n):
    """Soft / one-hot dense labels: labels block is (tile_n, C) float."""
    c = pl.program_id(0)          # chunk axis (CORE_PARALLEL on v7x)
    s = pl.program_id(1)          # step within chunk (reduction axis)

    @pl.when(s == 0)
    def _():
        out_ref[...] = jnp.zeros_like(out_ref)

    x = logits_ref[...].astype(jnp.float32)      # (TN, C)
    y = labels_ref[...].astype(jnp.float32)      # (TN, C)

    # Stable softmax pieces along the class (lane) axis.
    m = jnp.max(x, axis=-1, keepdims=True)                    # (TN, 1)
    shifted = x - m                                           # (TN, C)
    ex = jnp.exp(shifted)                                     # (TN, C)
    denom = jnp.sum(ex, axis=-1, keepdims=True)               # (TN, 1)
    log_denom = jnp.log(denom)                                # (TN, 1)
    inv_denom = 1.0 / denom                                   # exact, (TN,1) only

    # Fused: ce_n - eps*poly_n = sum_c y * (log_denom - shifted - eps*inv_denom*ex)
    t = (log_denom - shifted) - (jnp.float32(epsilon) * inv_denom) * ex
    fused = jnp.sum(y * t, axis=-1, keepdims=True)            # (TN, 1)

    # Row-validity mask (ragged last block / clamped out-of-range blocks).
    row0 = (c * pl.num_programs(1) + s) * tile_n
    fused = jnp.where(_row_mask(fused.shape, row0, n_total), fused, 0.0)

    out_ref[...] = out_ref[...] + jnp.sum(fused, axis=0, keepdims=True)


def _poly_ce_index_kernel(logits_ref, labels_ref, out_ref, *, epsilon, n_total, tile_n):
    """Hard labels: labels block is (tile_n, 1) int32 class indices."""
    c = pl.program_id(0)
    s = pl.program_id(1)

    @pl.when(s == 0)
    def _():
        out_ref[...] = jnp.zeros_like(out_ref)

    x = logits_ref[...].astype(jnp.float32)      # (TN, C)
    lbl = labels_ref[...]                        # (TN, 1) int32

    m = jnp.max(x, axis=-1, keepdims=True)
    shifted = x - m
    ex = jnp.exp(shifted)
    denom = jnp.sum(ex, axis=-1, keepdims=True)
    log_denom = jnp.log(denom)

    # One-hot gather without materializing a dense one-hot or an extra multiply.
    col_ids = jax.lax.broadcasted_iota(jnp.int32, x.shape, 1)             # (TN, C)
    s_label = jnp.sum(jnp.where(col_ids == lbl, shifted, 0.0),
                      axis=-1, keepdims=True)                             # (TN, 1)

    ce_n = log_denom - s_label                                            # (TN, 1)
    poly_n = jnp.exp(s_label - log_denom)                                 # softmax@target
    fused = ce_n - jnp.float32(epsilon) * poly_n

    row0 = (c * pl.num_programs(1) + s) * tile_n
    fused = jnp.where(_row_mask(fused.shape, row0, n_total), fused, 0.0)

    out_ref[...] = out_ref[...] + jnp.sum(fused, axis=0, keepdims=True)


# ---------------------------------------------------------------------------
# Wrapper
# ---------------------------------------------------------------------------

_MAX_TILE_ROWS = 8192


def _round_up(x, m):
    return ((x + m - 1) // m) * m


def _lane_pad(c):
    return _round_up(max(int(c), 1), 128)


def _tpu_generation_params():
    """Returns (vmem_limit_bytes, streamed_input_budget_bytes, two_tensorcores)."""
    cap = None
    try:
        cap = int(pltpu.get_tpu_info().vmem_capacity_bytes)
    except Exception:
        cap = None
    two_tc = False
    try:
        kind = jax.devices()[0].device_kind.lower()
        two_tc = ("v7" in kind) or ("tpu7" in kind)     # v7x: 2 TensorCores / chip
    except Exception:
        two_tc = False
    if cap is None:
        # Conservative fallback sized for the smallest-VMEM generation (v7x, 64 MiB/TC).
        return 48 * 2**20, 28 * 2**20, two_tc
    vmem_limit = min((cap * 3) // 4, 96 * 2**20)        # 128 MiB -> 96 MiB, 64 MiB -> 48 MiB
    input_budget = min(cap // 2, 64 * 2**20)            # 128 MiB -> 64 MiB, 64 MiB -> 32 MiB
    return vmem_limit, input_budget, two_tc


def poly_cross_entropy(logits, labels, epsilon=1.0, num_chunks=None):
    """logits: (N, C) float (f32 or bf16).
    labels: (N,) integer class indices (fast path) OR (N, C) float soft/one-hot targets.
    """
    N, C = logits.shape
    hard = (labels.ndim == 1)

    vmem_limit, input_budget, two_tc = _tpu_generation_params()
    if num_chunks is None:
        num_chunks = 2 if two_tc else 1       # serial split is pure overhead on 1-TC chips

    # --- VMEM accounting with lane/sublane padding (double-buffered inputs) ----
    logit_itemsize = jnp.dtype(logits.dtype).itemsize
    row_bytes = 2 * _lane_pad(C) * logit_itemsize
    if hard:
        row_bytes += 2 * 128 * 4              # (tile_n,1) int32 pads to 128 lanes
        granule = 16 if logit_itemsize < 4 else 8
    else:
        lbl_itemsize = jnp.dtype(labels.dtype).itemsize
        row_bytes += 2 * _lane_pad(C) * lbl_itemsize
        granule = 16 if (logit_itemsize < 4 or lbl_itemsize < 4) else 8

    if N <= granule:
        tile_n = N                            # block == full first dim: always legal
    else:
        tile_n = input_budget // max(row_bytes, 1)
        tile_n = min(tile_n, _MAX_TILE_ROWS, _round_up(N, granule))
        tile_n = max(granule, (tile_n // granule) * granule)

    nblocks = pl.cdiv(N, tile_n)
    num_chunks = max(1, min(int(num_chunks), nblocks))
    steps = pl.cdiv(nblocks, num_chunks)

    # Ragged chunking: clamp out-of-range block indices to the last real block; the
    # in-kernel row mask (computed from the *unclamped* grid position) zeroes them.
    if num_chunks * steps == nblocks:
        row_map = lambda c, s: (c * steps + s, 0)
    else:
        last_block = nblocks - 1
        row_map = lambda c, s: (jnp.minimum(c * steps + s, last_block), 0)

    if hard:
        labels_arr = labels.astype(jnp.int32).reshape(N, 1)
        label_block = (tile_n, 1)
        kernel = functools.partial(_poly_ce_index_kernel,
                                   epsilon=float(epsilon), n_total=N, tile_n=tile_n)
    else:
        labels_arr = labels
        label_block = (tile_n, C)
        kernel = functools.partial(_poly_ce_dense_kernel,
                                   epsilon=float(epsilon), n_total=N, tile_n=tile_n)

    # Real 2-TensorCore split only on v7x; plain serial reduction elsewhere.
    chunk_sem = pltpu.CORE_PARALLEL if (two_tc and num_chunks > 1) else pltpu.ARBITRARY

    partials = pl.pallas_call(
        kernel,
        out_shape=jax.ShapeDtypeStruct((1, 128 * num_chunks), jnp.float32),
        grid_spec=pltpu.PrefetchScalarGridSpec(
            num_scalar_prefetch=0,
            grid=(num_chunks, steps),
            in_specs=[
                pl.BlockSpec((tile_n, C), row_map),
                pl.BlockSpec(label_block, row_map),
            ],
            # lane-dense (1,128) output block per chunk; accumulated in-place
            out_specs=pl.BlockSpec((1, 128), lambda c, s: (0, c)),
        ),
        compiler_params=pltpu.CompilerParams(
            dimension_semantics=(chunk_sem, pltpu.ARBITRARY),
            vmem_limit_bytes=int(vmem_limit),
        ),
    )(logits, labels_arr)

    per_chunk = partials.reshape(num_chunks, 128)[:, 0]
    # finish the mean and add the constant epsilon term in plain JAX
    return jnp.sum(per_chunk) / jnp.float32(N) + jnp.float32(epsilon)


# ---------------------------------------------------------------------------
# Reference
# ---------------------------------------------------------------------------

def poly_cross_entropy_ref(logits, labels_onehot, epsilon=1.0):
    lsm = jax.nn.log_softmax(logits.astype(jnp.float32), axis=1)
    sm = jax.nn.softmax(logits.astype(jnp.float32), axis=1)
    ce_mean = jnp.mean(-jnp.sum(labels_onehot * lsm, axis=1))
    poly1 = jnp.sum(labels_onehot * sm, axis=1)
    return jnp.mean(ce_mean + epsilon * (1.0 - poly1))


if __name__ == "__main__":
    key = jax.random.PRNGKey(0)
    k_logits, k_labels = jax.random.split(key)

    N, C = 32, 16
    logits = jax.random.normal(k_logits, (N, C), dtype=jnp.float32)
    label_idx = jax.random.randint(k_labels, (N,), 0, C)
    labels_1h = jax.nn.one_hot(label_idx, C, dtype=jnp.float32)

    ref = poly_cross_entropy_ref(logits, labels_1h, epsilon=1.0)

    # hard-label fast path (int32 indices streamed, one-hot built in-kernel)
    loss_idx = jax.block_until_ready(poly_cross_entropy(logits, label_idx, epsilon=1.0))
    assert jnp.allclose(loss_idx, ref, atol=1e-4, rtol=1e-4), (loss_idx, ref)

    # dense soft/one-hot label path (exact reciprocal -> tight tolerance)
    loss_dense = jax.block_until_ready(poly_cross_entropy(logits, labels_1h, epsilon=1.0))
    assert jnp.allclose(loss_dense, ref, atol=1e-4, rtol=1e-4), (loss_dense, ref)

    # bf16-streamed logits (halves HBM traffic); math is still f32 in-kernel
    loss_bf16 = jax.block_until_ready(
        poly_cross_entropy(logits.astype(jnp.bfloat16), label_idx, epsilon=1.0))
    assert jnp.allclose(loss_bf16, ref, atol=5e-2, rtol=5e-2), (loss_bf16, ref)

    # ragged case: N not a multiple of the tile granule, no padding copy anywhere
    N2 = 27
    logits2 = jax.random.normal(k_logits, (N2, C), dtype=jnp.float32)
    idx2 = jax.random.randint(k_labels, (N2,), 0, C)
    ref2 = poly_cross_entropy_ref(logits2, jax.nn.one_hot(idx2, C, dtype=jnp.float32))
    loss2 = jax.block_until_ready(poly_cross_entropy(logits2, idx2, epsilon=1.0))
    assert jnp.allclose(loss2, ref2, atol=1e-4, rtol=1e-4), (loss2, ref2)

    print("KERNEL_OK")
</pallas_src>

<mosaic_0001>
module attributes {stable_mosaic.version = 11 : i64} {
  func.func @_poly_ce_index_kernel(%arg0: i32, %arg1: i32, %arg2: memref<32x16xf32, #tpu.memory_space<vmem>>, %arg3: memref<32x1xi32, #tpu.memory_space<vmem>>, %arg4: memref<1x128xf32, #tpu.memory_space<vmem>>) attributes {dimension_semantics = [#tpu.dimension_semantics<arbitrary>, #tpu.dimension_semantics<arbitrary>], iteration_bounds = array<i64: 1, 1>, scalar_prefetch = 0 : i64, scratch_operands = 0 : i64, tpu.core_type = #tpu.core_type<tc>, window_params = [{transform_indices = @transform_0, window_bounds = array<i64: 32, 16>}, {transform_indices = @transform_1, window_bounds = array<i64: 32, 1>}, {transform_indices = @transform_2, window_bounds = array<i64: 1, 128>}]} {
    %c0_i32 = arith.constant 0 : i32
    %0 = arith.cmpi eq, %arg1, %c0_i32 : i32
    %1 = arith.extui %0 : i1 to i32
    %c0_i32_0 = arith.constant 0 : i32
    %2 = arith.cmpi ne, %1, %c0_i32_0 : i32
    scf.if %2 {
      %cst_15 = arith.constant 0.000000e+00 : f32
      %42 = vector.broadcast %cst_15 : f32 to vector<1x128xf32>
      %c0_16 = arith.constant 0 : index
      %c0_17 = arith.constant 0 : index
      %43 = vector.load %arg4[%c0_16, %c0_17] : memref<1x128xf32, #tpu.memory_space<vmem>>, vector<1x128xf32>
      tpu.vector_store %arg4[%c0_16, %c0_17], %42 {strides = array<i32>} : memref<1x128xf32, #tpu.memory_space<vmem>>, vector<1x128xf32>,
    } else {
    }
    %c0 = arith.constant 0 : index
    %c0_1 = arith.constant 0 : index
    %3 = vector.load %arg2[%c0, %c0_1] : memref<32x16xf32, #tpu.memory_space<vmem>>, vector<32x16xf32>
    %c0_2 = arith.constant 0 : index
    %c0_3 = arith.constant 0 : index
    %4 = vector.load %arg3[%c0_2, %c0_3] : memref<32x1xi32, #tpu.memory_space<vmem>>, vector<32x1xi32>
    %cst = arith.constant dense<0xFF800000> : vector<32xf32>
    %5 = vector.multi_reduction <maximumf>, %3, %cst [1] : vector<32x16xf32> to vector<32xf32>
    %6 = vector.shape_cast %5 : vector<32xf32> to vector<32x1xf32>
    %7 = vector.broadcast %6 : vector<32x1xf32> to vector<32x16xf32>
    %8 = arith.subf %3, %7 : vector<32x16xf32>
    %9 = math.exp %8 : vector<32x16xf32>
    %cst_4 = arith.constant dense<0.000000e+00> : vector<32xf32>
    %10 = vector.multi_reduction <add>, %9, %cst_4 [1] : vector<32x16xf32> to vector<32xf32>
    %11 = vector.shape_cast %10 : vector<32xf32> to vector<32x1xf32>
    %12 = math.log %11 : vector<32x1xf32>
    %13 = tpu.iota {dimensions = array<i32: 1>} : vector<32x16xi32>
    %14 = vector.broadcast %4 : vector<32x1xi32> to vector<32x16xi32>
    %15 = arith.cmpi eq, %13, %14 : vector<32x16xi32>
    %cst_5 = arith.constant 0.000000e+00 : f32
    %16 = vector.broadcast %cst_5 : f32 to vector<32x16xf32>
    %17 = arith.select %15, %8, %16 : vector<32x16xi1>, vector<32x16xf32>
    %cst_6 = arith.constant dense<0.000000e+00> : vector<32xf32>
    %18 = vector.multi_reduction <add>, %17, %cst_6 [1] : vector<32x16xf32> to vector<32xf32>
    %19 = vector.shape_cast %18 : vector<32xf32> to vector<32x1xf32>
    %20 = arith.subf %12, %19 : vector<32x1xf32>
    %21 = arith.subf %19, %12 : vector<32x1xf32>
    %22 = math.exp %21 : vector<32x1xf32>
    %cst_7 = arith.constant 1.000000e+00 : f32
    %23 = vector.broadcast %cst_7 : f32 to vector<32x1xf32>
    %24 = arith.mulf %23, %22 : vector<32x1xf32>
    %25 = arith.subf %20, %24 : vector<32x1xf32>
    %c1_i32 = arith.constant 1 : i32
    %26 = arith.muli %arg0, %c1_i32 : i32
    %27 = arith.addi %26, %arg1 : i32
    %c32_i32 = arith.constant 32 : i32
    %28 = arith.muli %27, %c32_i32 : i32
    %29 = tpu.iota {dimensions = array<i32: 0>} : vector<32x1xi32>
    %30 = vector.broadcast %28 : i32 to vector<32x1xi32>
    %31 = arith.addi %29, %30 : vector<32x1xi32>
    %c32_i32_8 = arith.constant 32 : i32
    %32 = vector.broadcast %c32_i32_8 : i32 to vector<32x1xi32>
    %33 = arith.cmpi slt, %31, %32 : vector<32x1xi32>
    %cst_9 = arith.constant 0.000000e+00 : f32
    %34 = vector.broadcast %cst_9 : f32 to vector<32x1xf32>
    %35 = arith.select %33, %25, %34 : vector<32x1xi1>, vector<32x1xf32>
    %c0_10 = arith.constant 0 : index
    %c0_11 = arith.constant 0 : index
    %36 = vector.load %arg4[%c0_10, %c0_11] : memref<1x128xf32, #tpu.memory_space<vmem>>, vector<1x128xf32>
    %cst_12 = arith.constant dense<0.000000e+00> : vector<1xf32>
    %37 = vector.multi_reduction <add>, %35, %cst_12 [0] : vector<32x1xf32> to vector<1xf32>
    %38 = vector.shape_cast %37 : vector<1xf32> to vector<1x1xf32>
    %39 = vector.broadcast %38 : vector<1x1xf32> to vector<1x128xf32>
    %40 = arith.addf %36, %39 : vector<1x128xf32>
    %c0_13 = arith.constant 0 : index
    %c0_14 = arith.constant 0 : index
    %41 = vector.load %arg4[%c0_13, %c0_14] : memref<1x128xf32, #tpu.memory_space<vmem>>, vector<1x128xf32>
    tpu.vector_store %arg4[%c0_13, %c0_14], %40 {strides = array<i32>} : memref<1x128xf32, #tpu.memory_space<vmem>>, vector<1x128xf32>,
    return
  }
  func.func @transform_0(%arg0: i32, %arg1: i32) -> (i32, i32) {
    %c1_i32 = arith.constant 1 : i32
    %0 = arith.muli %arg0, %c1_i32 : i32
    %1 = arith.addi %0, %arg1 : i32
    %c0_i32 = arith.constant 0 : i32
    %c0_i32_0 = arith.constant 0 : i32
    return %1, %c0_i32 : i32, i32
  }
  func.func @transform_1(%arg0: i32, %arg1: i32) -> (i32, i32) {
    %c1_i32 = arith.constant 1 : i32
    %0 = arith.muli %arg0, %c1_i32 : i32
    %1 = arith.addi %0, %arg1 : i32
    %c0_i32 = arith.constant 0 : i32
    %c0_i32_0 = arith.constant 0 : i32
    return %1, %c0_i32 : i32, i32
  }
  func.func @transform_2(%arg0: i32, %arg1: i32) -> (i32, i32) {
    %c0_i32 = arith.constant 0 : i32
    %c0_i32_0 = arith.constant 0 : i32
    return %c0_i32, %arg0 : i32, i32
  }
}

</mosaic_0001>

<llo_original>
// kernel: tpu_custom_call.1
$region0: #{tpu_custom_call.1}
  #allocation0 [shape = 'u32[]', space=smem, size = 0x4, offset = 0x4, fixed_abs, tag = 'smem constant byte address 0x4 - core index']
  #allocation1 [shape = 'u32[144,128]{1,0:T(1,128)}', space=vmem, size = 0x12000, scoped, tag = 'internal scratch']
  %s0 = inlined_call_operand.vmem [shape: f32[32,16], index: 0, kind: input, shape index: {}]
  %s1 = inlined_call_operand.vmem [shape: s32[32,1], index: 1, kind: input, shape index: {}]
  %s2 = inlined_call_operand.hbm [shape: f32[1,128], index: 2, kind: output, shape index: {}]
  %s3 = sld [smem:[#allocation0]]
  $region22: #{tpu_custom_call.1} parent=0
    _
  %s5 = ssub.s32 1, %s3
  %s6 = scalar_select 0, %s5, %s3
  $region1: #{tpu_custom_call.1} parent=0
    #allocation2 [shape = 'u8[512]{0}', space=vmem, size = 0x400, scoped, tag = 'output window, operand 0, single buffered']
    #allocation3 [shape = 's32[1]{0}', space=sflag, size = 0x4, scoped, tag = 'scoped memory for tpu_custom_call.1']
    %7 = vsyncpa [#allocation3], 0
    // Predicated region
    $region2: #{tpu_custom_call.1} parent=1 // pred_check
      _
    $region3: #{tpu_custom_call.1} parent=1 // pred_check_branch
      %9 = sbr.rel (0) target = $region5
    $region4: #{tpu_custom_call.1} parent=1 // pred_region
      %s10 = sadd.s32 0, 0
      %s11 = smul.u32 4, %s10
      %p12 = scmp.lt.s32.totalorder %s11, 3
      %s13 = scalar_select %p12, %s11, 3
      %s14 = smul.addr %s13, 8
      %s15 = scalar_lea.vmem %s0, %s14
      %s16 = sadd.s32 0, 0
      %s17 = smul.u32 4, %s16
    $region5: #{tpu_custom_call.1} parent=1 // pred_fallthru
      _
    // Predicated region
    $region6: #{tpu_custom_call.1} parent=1 // pred_check
      _
    $region7: #{tpu_custom_call.1} parent=1 // pred_check_branch
      %19 = sbr.rel (0) target = $region9
    $region8: #{tpu_custom_call.1} parent=1 // pred_region
      %s20 = sadd.s32 0, 0
      %s21 = smul.u32 4, %s20
      %p22 = scmp.lt.s32.totalorder %s21, 3
      %s23 = scalar_select %p22, %s21, 3
      %s24 = smul.addr %s23, 8
      %s25 = scalar_lea.vmem %s1, %s24
      %s26 = sadd.s32 0, 0
      %s27 = smul.u32 4, %s26
    $region9: #{tpu_custom_call.1} parent=1 // pred_fallthru
      _
    %s28 = sadd.s32 0, 0
    %s29 = smul.u32 4, %s28
    %p30 = scmp.lt.s32.totalorder %s29, 3
    %s31 = scalar_select %p30, %s29, 3
    %s32 = smul.addr %s31, 8
    %s33 = scalar_lea.vmem %s0, %s32
    %s34 = sadd.s32 0, 0
    %s35 = smul.u32 4, %s34
    %p36 = scmp.lt.s32.totalorder %s35, 3
    %s37 = scalar_select %p36, %s35, 3
    %s38 = smul.addr %s37, 8
    %s39 = scalar_lea.vmem %s1, %s38
    %s40 = sadd.s32 0, 0
    %s41 = smul.u32 4, %s40
    %p42 = scmp.lt.s32.totalorder %s41, 3
    %s43 = scalar_select %p42, %s41, 3
    %s44 = smul.addr %s43, 8
    %s45 = scalar_lea.vmem %s0, %s44
    %s46 = sadd.s32 0, 0
    %s47 = smul.u32 4, %s46
    %s48 = sadd.s32 0, 0
    %s49 = smul.u32 4, %s48
    %p50 = scmp.lt.s32.totalorder %s49, 3
    %s51 = scalar_select %p50, %s49, 3
    %s52 = smul.addr %s51, 8
    %s53 = scalar_lea.vmem %s1, %s52
    %s54 = sadd.s32 0, 0
    %s55 = smul.u32 4, %s54
    %p56 = scmp.eq.s32.totalorder 0, 0
    // Predicated region
    $region10: #{tpu_custom_call.1} parent=1 // pred_check
      %p57 = pneg %p56
    $region11: #{tpu_custom_call.1} parent=1 // pred_check_branch
      %59 = sbr.rel (%p57) target = $region13
    $region12: #{tpu_custom_call.1} parent=1 // pred_region
      %60 = vst [vmem:[#allocation2] sm:$0x1] 0.0
    $region13: #{tpu_custom_call.1} parent=1 // pred_fallthru
      _
    %v61 = vld [vmem:[%s45] sm:$0xff]
    %v62 = vld [vmem:[%s45 + $0x8] sm:$0xff]
    %v63 = vld [vmem:[%s45 + $0x10] sm:$0xff]
    %v64 = vld [vmem:[%s45 + $0x18] sm:$0xff]
    %v65 = vld [vmem:[%s53] sm:$0xff]
    %v66 = vld [vmem:[%s53 + $0x8] sm:$0xff]
    %v67 = vld [vmem:[%s53 + $0x10] sm:$0xff]
    %v68 = vld [vmem:[%s53 + $0x18] sm:$0xff]
    %vm69 = vcmask 130048
    %v70 = vsel %vm69, %v61, -inf
    %71 = vmax.xlane.f32.xlu0 %v70
    %v72 = vpop.xlane.xlu0 %71
    %v73 = vsel %vm69, %v62, -inf
    %74 = vmax.xlane.f32.xlu0 %v73
    %v75 = vpop.xlane.xlu0 %74
    %v76 = vsel %vm69, %v63, -inf
    %77 = vmax.xlane.f32.xlu0 %v76
    %v78 = vpop.xlane.xlu0 %77
    %v79 = vsel %vm69, %v64, -inf
    %80 = vmax.xlane.f32.xlu0 %v79
    %v81 = vpop.xlane.xlu0 %80
    %v82 = vsub.f32 %v61, %v72
    %v83 = vsub.f32 %v62, %v75
    %v84 = vsub.f32 %v63, %v78
    %v85 = vsub.f32 %v64, %v81
    %v86 = vmul.f32 %v82, 1.442695
    %v87 = vpow.pop %v86
    %v88 = vmul.f32 %v83, 1.442695
    %v89 = vpow.pop %v88
    %v90 = vmul.f32 %v84, 1.442695
    %v91 = vpow.pop %v90
    %v92 = vmul.f32 %v85, 1.442695
    %v93 = vpow.pop %v92
    %v94 = vsel %vm69, %v87, 0.0
    %95 = vadd.xlane.f32.xlu0 %v94
    %v96 = vpop.xlane.xlu0 %95
    %v97 = vsel %vm69, %v89, 0.0
    %98 = vadd.xlane.f32.xlu0 %v97
    %v99 = vpop.xlane.xlu0 %98
    %v100 = vsel %vm69, %v91, 0.0
    %101 = vadd.xlane.f32.xlu0 %v100
    %v102 = vpop.xlane.xlu0 %101
    %v103 = vsel %vm69, %v93, 0.0
    %104 = vadd.xlane.f32.xlu0 %v103
    %v105 = vpop.xlane.xlu0 %104
    %v106 = vlog2.pop %v96
    %v107 = vmul.f32 %v106, 0.6931472
    %v108 = vlog2.pop %v99
    %v109 = vmul.f32 %v108, 0.6931472
    %v110 = vlog2.pop %v102
    %v111 = vmul.f32 %v110, 0.6931472
    %v112 = vlog2.pop %v105
    %v113 = vmul.f32 %v112, 0.6931472
    %v114 = vlaneseq
    %v115 = vand.u32 %v114, 127
    %116 = vset.pattern.permute.xlu0 0
    %117 = vperm.xlu0 %116, %v65
    %v118 = vpop.permute.xlu0 %117
    %119 = vset.pattern.permute.xlu0 0
    %120 = vperm.xlu0 %119, %v66
    %v121 = vpop.permute.xlu0 %120
    %122 = vset.pattern.permute.xlu0 0
    %123 = vperm.xlu0 %122, %v67
    %v124 = vpop.permute.xlu0 %123
    %125 = vset.pattern.permute.xlu0 0
    %126 = vperm.xlu0 %125, %v68
    %v127 = vpop.permute.xlu0 %126
    %vm128 = vcmp.eq.s32.totalorder %v115, %v118
    %vm129 = vcmp.eq.s32.totalorder %v115, %v121
    %vm130 = vcmp.eq.s32.totalorder %v115, %v124
    %vm131 = vcmp.eq.s32.totalorder %v115, %v127
    %v132 = vsel %vm128, %v82, 0.0
    %v133 = vsel %vm129, %v83, 0.0
    %v134 = vsel %vm130, %v84, 0.0
    %v135 = vsel %vm131, %v85, 0.0
    %v136 = vsel %vm69, %v132, 0.0
    %137 = vadd.xlane.f32.xlu0 %v136
    %v138 = vpop.xlane.xlu0 %137
    %v139 = vsel %vm69, %v133, 0.0
    %140 = vadd.xlane.f32.xlu0 %v139
    %v141 = vpop.xlane.xlu0 %140
    %v142 = vsel %vm69, %v134, 0.0
    %143 = vadd.xlane.f32.xlu0 %v142
    %v144 = vpop.xlane.xlu0 %143
    %v145 = vsel %vm69, %v135, 0.0
    %146 = vadd.xlane.f32.xlu0 %v145
    %v147 = vpop.xlane.xlu0 %146
    %v148 = vsub.f32 %v107, %v138
    %v149 = vsub.f32 %v109, %v141
    %v150 = vsub.f32 %v111, %v144
    %v151 = vsub.f32 %v113, %v147
    %v152 = vsub.f32 %v138, %v107
    %v153 = vsub.f32 %v141, %v109
    %v154 = vsub.f32 %v144, %v111
    %v155 = vsub.f32 %v147, %v113
    %v156 = vmul.f32 %v152, 1.442695
    %v157 = vpow.pop %v156
    %v158 = vmul.f32 %v153, 1.442695
    %v159 = vpow.pop %v158
    %v160 = vmul.f32 %v154, 1.442695
    %v161 = vpow.pop %v160
    %v162 = vmul.f32 %v155, 1.442695
    %v163 = vpow.pop %v162
    %v164 = vsub.f32 %v148, %v157
    %v165 = vsub.f32 %v149, %v159
    %v166 = vsub.f32 %v150, %v161
    %v167 = vsub.f32 %v151, %v163
    %s168 = sadd.s32 0, 0
    %s169 = smul.u32 %s168, 32
    %v170 = vlaneseq
    %v171 = vshrl.u32 %v170, 7
    %v172 = vadd.s32 %v171, 8
    %v173 = vadd.s32 %v171, 16
    %v174 = vadd.s32 %v171, 24
    %v175 = vstv %s169
    %v176 = vadd.s32 %v171, %v175
    %v177 = vadd.s32 %v172, %v175
    %v178 = vadd.s32 %v173, %v175
    %v179 = vadd.s32 %v174, %v175
    %vm180 = vcmp.lt.s32.totalorder %v176, 32
    %vm181 = vcmp.lt.s32.totalorder %v177, 32
    %vm182 = vcmp.lt.s32.totalorder %v178, 32
    %vm183 = vcmp.lt.s32.totalorder %v179, 32
    %v184 = vsel %vm180, %v164, 0.0
    %v185 = vsel %vm181, %v165, 0.0
    %v186 = vsel %vm182, %v166, 0.0
    %v187 = vsel %vm183, %v167, 0.0
    %v188 = vld [vmem:[#allocation2] sm:$0x1]
    %v189 = vadd.f32 %v184, %v185
    %v190 = vadd.f32 %v189, %v186
    %v191 = vadd.f32 %v190, %v187
    %v192 = vrot.slane %v191, 4
    %v193 = vadd.f32 %v191, %v192
    %v194 = vrot.slane %v193, 2
    %v195 = vadd.f32 %v193, %v194
    %v196 = vrot.slane %v195, 1
    %v197 = vadd.f32 %v195, %v196
    %v198 = vadd.f32 %v188, %v197
    %199 = vst [vmem:[#allocation2] sm:$0x1] %v198
    // Predicated region
    $region14: #{tpu_custom_call.1} parent=1 // pred_check
      _
    $region15: #{tpu_custom_call.1} parent=1 // pred_check_branch
      %201 = sbr.rel (0) target = $region17
    $region16: #{tpu_custom_call.1} parent=1 // pred_region
      %s203 = ssub.s32 16, 16
      %204 = vsyncadd [#allocation3], %s203
      %s206 = sshll.u32 [#allocation2], 4
      %s207 = int_to_ptr.vmem [resolvable:$true] %s206
      %209 = dma.vmem_to_hbm [thread:$0]  %s207, 16, %s2, [#allocation3]
    $region17: #{tpu_custom_call.1} parent=1 // pred_fallthru
      _
    // Predicated region
    $region18: #{tpu_custom_call.1} parent=1 // pred_check
      _
    $region19: #{tpu_custom_call.1} parent=1 // pred_check_branch
      %211 = sbr.rel (0) target = $region21
    $region20: #{tpu_custom_call.1} parent=1 // pred_region
      %212 = dma.done [#allocation3], 16
    $region21: #{tpu_custom_call.1} parent=1 // pred_fallthru
      _
    %213 = vsyncpa [#allocation3], 1

</llo_original>
